<compile_context>
chip_gen: v5e
topology: v5e:2x2
jax: 0.10.0
libtpu: 0.0.40
codegen_flags: <defaults>
</compile_context>

<pallas_src>
import jax
import jax.numpy as jnp
from jax.experimental import pallas as pl
from jax.experimental.pallas import tpu as pltpu


# ---------------------------------------------------------------------------
# Fused kernel: two graph-conv layers + one-hot edge gather + edge MLP.
# ---------------------------------------------------------------------------
def _gcn_fused_kernel(
    a_ref,      # VMEM (N, N)       bf16   weighted adjacency
    x_ref,      # VMEM (N, Din)     bf16   node features
    w1_ref,     # VMEM (Din, Dout)  bf16   fc1.weight^T
    w3_ref,     # VMEM (Dout, Dout) bf16   fc3.weight^T
    w1a_ref,    # VMEM (Dout, eta)  bf16   linear1.weight[:, :gamma]^T
    w1b_ref,    # VMEM (Dout, eta)  bf16   linear1.weight[:, gamma:]^T
    b1_ref,     # VMEM (1, eta)     f32    linear1.bias
    w3row_ref,  # VMEM (1, eta)     f32    linear3.weight (row vector)
    src_ref,    # VMEM (E, 1)       int32  edge source node ids
    dst_ref,    # VMEM (E, 1)       int32  edge dest   node ids
    o_ref,      # VMEM (E, 1)       f32    output
):
    a = a_ref[...]  # load A once; reused by both graph-conv layers

    # ---- Layer 1: relu((A @ X) @ W1) ---------------------------------------
    ax = jnp.dot(a, x_ref[...], preferred_element_type=jnp.float32)
    x1 = jnp.maximum(
        jnp.dot(ax.astype(jnp.bfloat16), w1_ref[...],
                preferred_element_type=jnp.float32),
        0.0,
    )

    # ---- Layer 2: relu((A @ X1) @ W3) --------------------------------------
    ax2 = jnp.dot(a, x1.astype(jnp.bfloat16), preferred_element_type=jnp.float32)
    x2 = jnp.maximum(
        jnp.dot(ax2.astype(jnp.bfloat16), w3_ref[...],
                preferred_element_type=jnp.float32),
        0.0,
    )
    x2b = x2.astype(jnp.bfloat16)  # (N, Dout)

    # ---- Vectorized edge gather: one-hot selection matrices on the MXU -----
    e = src_ref.shape[0]
    n = a_ref.shape[0]
    node_ids = jax.lax.broadcasted_iota(jnp.int32, (e, n), 1)       # (E, N)
    sel_src = jnp.where(node_ids == src_ref[...], 1.0, 0.0).astype(jnp.bfloat16)
    sel_dst = jnp.where(node_ids == dst_ref[...], 1.0, 0.0).astype(jnp.bfloat16)
    # Exact row selection of bf16 values (f32 accumulation of a one-hot dot).
    xs = jnp.dot(sel_src, x2b, preferred_element_type=jnp.float32).astype(jnp.bfloat16)
    xd = jnp.dot(sel_dst, x2b, preferred_element_type=jnp.float32).astype(jnp.bfloat16)

    # ---- Edge MLP: sigmoid(cat([xs, xd]) @ W_l1^T + b1) -> linear3 ---------
    h = (
        jnp.dot(xs, w1a_ref[...], preferred_element_type=jnp.float32)
        + jnp.dot(xd, w1b_ref[...], preferred_element_type=jnp.float32)
        + b1_ref[...]
    )
    h = jax.nn.sigmoid(h)  # f32 elementwise (EUP)

    # Final 1-wide projection as a VPU/XLU reduction (not a 1-col MXU matmul).
    o_ref[...] = jnp.sum(h * w3row_ref[...], axis=-1, keepdims=True).astype(
        o_ref.dtype
    )


def _gcn_pallas_forward(params, A, X, edges_src, edges_dst):
    e = edges_src.shape[0]
    vmem = pl.BlockSpec(memory_space=pltpu.MemorySpace.VMEM)

    return pl.pallas_call(
        _gcn_fused_kernel,
        out_shape=jax.ShapeDtypeStruct((e, 1), jnp.float32),
        in_specs=[vmem] * 10,
        out_specs=vmem,
    )(
        A.astype(jnp.bfloat16),
        X.astype(jnp.bfloat16),
        params["fc1_wt"],
        params["fc3_wt"],
        params["lin1_wa"],
        params["lin1_wb"],
        params["lin1_b"],
        params["lin3_row"],
        edges_src.astype(jnp.int32).reshape(e, 1),
        edges_dst.astype(jnp.int32).reshape(e, 1),
    )


_gcn_pallas_forward_jit = jax.jit(_gcn_pallas_forward)


def gcn_forward(params, A, X, edges_src, edges_dst):
    output = _gcn_pallas_forward_jit(params, A, X, edges_src, edges_dst)
    weight_norm = 0
    return output, A, weight_norm


# ---------------------------------------------------------------------------
# Pure-JAX reference (same bf16 operand casts) for a correctness check.
# ---------------------------------------------------------------------------
def _gcn_reference(params, A, X, edges_src, edges_dst):
    bf = jnp.bfloat16
    a = A.astype(bf)
    ax = jnp.dot(a, X.astype(bf), preferred_element_type=jnp.float32)
    x1 = jnp.maximum(
        jnp.dot(ax.astype(bf), params["fc1_wt"], preferred_element_type=jnp.float32),
        0.0)
    ax2 = jnp.dot(a, x1.astype(bf), preferred_element_type=jnp.float32)
    x2 = jnp.maximum(
        jnp.dot(ax2.astype(bf), params["fc3_wt"], preferred_element_type=jnp.float32),
        0.0)
    x2b = x2.astype(bf)
    xs = x2b[edges_src]
    xd = x2b[edges_dst]
    h = (jnp.dot(xs, params["lin1_wa"], preferred_element_type=jnp.float32)
         + jnp.dot(xd, params["lin1_wb"], preferred_element_type=jnp.float32)
         + params["lin1_b"])
    h = jax.nn.sigmoid(h)
    return jnp.sum(h * params["lin3_row"], axis=-1, keepdims=True)


# ---------------------------------------------------------------------------
# Parameter init (PyTorch nn.Linear default init), pre-transposed / pre-split
# / pre-cast once so the forward wrapper does no per-call weight reshaping.
# ---------------------------------------------------------------------------
def init_linear(key, out_f, in_f, bias):
    bound = 1.0 / jnp.sqrt(jnp.float32(in_f))
    kw, kb = jax.random.split(key)
    w = jax.random.uniform(kw, (out_f, in_f), jnp.float32, -bound, bound)
    b = (
        jax.random.uniform(kb, (out_f,), jnp.float32, -bound, bound)
        if bias
        else None
    )
    return w, b


def make_gcn_params(key, dim_in, dim_out):
    eta = int(dim_out)
    gamma = int(dim_out)
    k1, k3, kl1, kl2, kl3 = jax.random.split(key, 5)
    fc1_w, _ = init_linear(k1, dim_out, dim_in, bias=False)
    fc3_w, _ = init_linear(k3, dim_out, dim_out, bias=False)
    lin1_w, lin1_b = init_linear(kl1, eta, 2 * gamma, bias=True)
    _lin2_w, _lin2_b = init_linear(kl2, eta, eta, bias=True)  # defined in torch __init__, unused in forward
    lin3_w, _ = init_linear(kl3, 1, eta, bias=False)

    return dict(
        fc1_wt=fc1_w.T.astype(jnp.bfloat16),                # (dim_in, dim_out)
        fc3_wt=fc3_w.T.astype(jnp.bfloat16),                # (dim_out, dim_out)
        lin1_wa=lin1_w[:, :gamma].T.astype(jnp.bfloat16),   # (gamma, eta)
        lin1_wb=lin1_w[:, gamma:].T.astype(jnp.bfloat16),   # (gamma, eta)
        lin1_b=lin1_b[None, :],                             # (1, eta) f32
        lin3_row=lin3_w,                                     # (1, eta) f32
    )


if __name__ == "__main__":
    # Small shapes consistent with the module: node_num -> 32, X_dim = 9,
    # dim_out (hidden) = 32, num_edges = 16.
    N = 32
    DIM_IN = 9
    DIM_OUT = 32
    E = 16

    key = jax.random.PRNGKey(0)
    ka, kp, ks, kd = jax.random.split(key, 4)

    # weighted adjacency A (eweight.reshape(N, N) stand-in)
    A = jax.random.uniform(ka, (N, N), jnp.float32)
    # X = torch.eye(N, X_dim)
    X = jnp.eye(N, DIM_IN, dtype=jnp.float32)
    # edge index pairs (pair.npy stand-in, built in-script)
    edges_src = jax.random.randint(ks, (E,), 0, N)
    edges_dst = jax.random.randint(kd, (E,), 0, N)

    params = make_gcn_params(kp, DIM_IN, DIM_OUT)

    output, A_out, weight_norm = gcn_forward(params, A, X, edges_src, edges_dst)
    output = jax.block_until_ready(output)

    assert output.shape == (E, 1)
    assert A_out.shape == (N, N)
    assert weight_norm == 0
    assert bool(jnp.all(jnp.isfinite(output)))

    ref = _gcn_reference(params, A, X, edges_src, edges_dst)
    assert bool(jnp.allclose(output, ref, atol=5e-2, rtol=5e-2))

    print("KERNEL_OK")
</pallas_src>

<mosaic_0001>
module attributes {stable_mosaic.version = 11 : i64} {
  func.func @_gcn_fused_kernel(%arg0: memref<32x32xbf16, #tpu.memory_space<vmem>>, %arg1: memref<32x9xbf16, #tpu.memory_space<vmem>>, %arg2: memref<9x32xbf16, #tpu.memory_space<vmem>>, %arg3: memref<32x32xbf16, #tpu.memory_space<vmem>>, %arg4: memref<32x32xbf16, #tpu.memory_space<vmem>>, %arg5: memref<32x32xbf16, #tpu.memory_space<vmem>>, %arg6: memref<1x32xf32, #tpu.memory_space<vmem>>, %arg7: memref<1x32xf32, #tpu.memory_space<vmem>>, %arg8: memref<16x1xi32, #tpu.memory_space<vmem>>, %arg9: memref<16x1xi32, #tpu.memory_space<vmem>>, %arg10: memref<16x1xf32, #tpu.memory_space<vmem>>) attributes {dimension_semantics = [], scalar_prefetch = 0 : i64, scratch_operands = 0 : i64, tpu.core_type = #tpu.core_type<tc>} {
    %c0 = arith.constant 0 : index
    %c0_0 = arith.constant 0 : index
    %0 = vector.load %arg0[%c0, %c0_0] : memref<32x32xbf16, #tpu.memory_space<vmem>>, vector<32x32xbf16>
    %c0_1 = arith.constant 0 : index
    %c0_2 = arith.constant 0 : index
    %1 = vector.load %arg1[%c0_1, %c0_2] : memref<32x9xbf16, #tpu.memory_space<vmem>>, vector<32x9xbf16>
    %cst = arith.constant dense<0.000000e+00> : vector<32x9xf32>
    %2 = tpu.matmul %0, %1, %cst {dimension_numbers = #tpu.dot_dimension_numbers<[1], [0], [0], [1], [0, 0, 1, 1], [], []>} : vector<32x32xbf16>, vector<32x9xbf16>, vector<32x9xf32> -> vector<32x9xf32>
    %3 = arith.truncf %2 : vector<32x9xf32> to vector<32x9xbf16>
    %c0_3 = arith.constant 0 : index
    %c0_4 = arith.constant 0 : index
    %4 = vector.load %arg2[%c0_3, %c0_4] : memref<9x32xbf16, #tpu.memory_space<vmem>>, vector<9x32xbf16>
    %cst_5 = arith.constant dense<0.000000e+00> : vector<32x32xf32>
    %5 = tpu.matmul %3, %4, %cst_5 {dimension_numbers = #tpu.dot_dimension_numbers<[1], [0], [0], [1], [0, 0, 1, 1], [], []>} : vector<32x9xbf16>, vector<9x32xbf16>, vector<32x32xf32> -> vector<32x32xf32>
    %cst_6 = arith.constant 0.000000e+00 : f32
    %6 = vector.broadcast %cst_6 : f32 to vector<32x32xf32>
    %7 = arith.maximumf %5, %6 : vector<32x32xf32>
    %8 = arith.truncf %7 : vector<32x32xf32> to vector<32x32xbf16>
    %cst_7 = arith.constant dense<0.000000e+00> : vector<32x32xf32>
    %9 = tpu.matmul %0, %8, %cst_7 {dimension_numbers = #tpu.dot_dimension_numbers<[1], [0], [0], [1], [0, 0, 1, 1], [], []>} : vector<32x32xbf16>, vector<32x32xbf16>, vector<32x32xf32> -> vector<32x32xf32>
    %10 = arith.truncf %9 : vector<32x32xf32> to vector<32x32xbf16>
    %c0_8 = arith.constant 0 : index
    %c0_9 = arith.constant 0 : index
    %11 = vector.load %arg3[%c0_8, %c0_9] : memref<32x32xbf16, #tpu.memory_space<vmem>>, vector<32x32xbf16>
    %cst_10 = arith.constant dense<0.000000e+00> : vector<32x32xf32>
    %12 = tpu.matmul %10, %11, %cst_10 {dimension_numbers = #tpu.dot_dimension_numbers<[1], [0], [0], [1], [0, 0, 1, 1], [], []>} : vector<32x32xbf16>, vector<32x32xbf16>, vector<32x32xf32> -> vector<32x32xf32>
    %cst_11 = arith.constant 0.000000e+00 : f32
    %13 = vector.broadcast %cst_11 : f32 to vector<32x32xf32>
    %14 = arith.maximumf %12, %13 : vector<32x32xf32>
    %15 = arith.truncf %14 : vector<32x32xf32> to vector<32x32xbf16>
    %16 = tpu.iota {dimensions = array<i32: 1>} : vector<16x32xi32>
    %c0_12 = arith.constant 0 : index
    %c0_13 = arith.constant 0 : index
    %17 = vector.load %arg8[%c0_12, %c0_13] : memref<16x1xi32, #tpu.memory_space<vmem>>, vector<16x1xi32>
    %18 = vector.broadcast %17 : vector<16x1xi32> to vector<16x32xi32>
    %19 = arith.cmpi eq, %16, %18 : vector<16x32xi32>
    %cst_14 = arith.constant 1.000000e+00 : f32
    %cst_15 = arith.constant 0.000000e+00 : f32
    %20 = vector.broadcast %cst_14 : f32 to vector<16x32xf32>
    %21 = vector.broadcast %cst_15 : f32 to vector<16x32xf32>
    %22 = arith.select %19, %20, %21 : vector<16x32xi1>, vector<16x32xf32>
    %23 = arith.truncf %22 : vector<16x32xf32> to vector<16x32xbf16>
    %c0_16 = arith.constant 0 : index
    %c0_17 = arith.constant 0 : index
    %24 = vector.load %arg9[%c0_16, %c0_17] : memref<16x1xi32, #tpu.memory_space<vmem>>, vector<16x1xi32>
    %25 = vector.broadcast %24 : vector<16x1xi32> to vector<16x32xi32>
    %26 = arith.cmpi eq, %16, %25 : vector<16x32xi32>
    %cst_18 = arith.constant 1.000000e+00 : f32
    %cst_19 = arith.constant 0.000000e+00 : f32
    %27 = vector.broadcast %cst_18 : f32 to vector<16x32xf32>
    %28 = vector.broadcast %cst_19 : f32 to vector<16x32xf32>
    %29 = arith.select %26, %27, %28 : vector<16x32xi1>, vector<16x32xf32>
    %30 = arith.truncf %29 : vector<16x32xf32> to vector<16x32xbf16>
    %cst_20 = arith.constant dense<0.000000e+00> : vector<16x32xf32>
    %31 = tpu.matmul %23, %15, %cst_20 {dimension_numbers = #tpu.dot_dimension_numbers<[1], [0], [0], [1], [0, 0, 1, 1], [], []>} : vector<16x32xbf16>, vector<32x32xbf16>, vector<16x32xf32> -> vector<16x32xf32>
    %32 = arith.truncf %31 : vector<16x32xf32> to vector<16x32xbf16>
    %cst_21 = arith.constant dense<0.000000e+00> : vector<16x32xf32>
    %33 = tpu.matmul %30, %15, %cst_21 {dimension_numbers = #tpu.dot_dimension_numbers<[1], [0], [0], [1], [0, 0, 1, 1], [], []>} : vector<16x32xbf16>, vector<32x32xbf16>, vector<16x32xf32> -> vector<16x32xf32>
    %34 = arith.truncf %33 : vector<16x32xf32> to vector<16x32xbf16>
    %c0_22 = arith.constant 0 : index
    %c0_23 = arith.constant 0 : index
    %35 = vector.load %arg4[%c0_22, %c0_23] : memref<32x32xbf16, #tpu.memory_space<vmem>>, vector<32x32xbf16>
    %cst_24 = arith.constant dense<0.000000e+00> : vector<16x32xf32>
    %36 = tpu.matmul %32, %35, %cst_24 {dimension_numbers = #tpu.dot_dimension_numbers<[1], [0], [0], [1], [0, 0, 1, 1], [], []>} : vector<16x32xbf16>, vector<32x32xbf16>, vector<16x32xf32> -> vector<16x32xf32>
    %c0_25 = arith.constant 0 : index
    %c0_26 = arith.constant 0 : index
    %37 = vector.load %arg5[%c0_25, %c0_26] : memref<32x32xbf16, #tpu.memory_space<vmem>>, vector<32x32xbf16>
    %cst_27 = arith.constant dense<0.000000e+00> : vector<16x32xf32>
    %38 = tpu.matmul %34, %37, %cst_27 {dimension_numbers = #tpu.dot_dimension_numbers<[1], [0], [0], [1], [0, 0, 1, 1], [], []>} : vector<16x32xbf16>, vector<32x32xbf16>, vector<16x32xf32> -> vector<16x32xf32>
    %39 = arith.addf %36, %38 : vector<16x32xf32>
    %c0_28 = arith.constant 0 : index
    %c0_29 = arith.constant 0 : index
    %40 = vector.load %arg6[%c0_28, %c0_29] : memref<1x32xf32, #tpu.memory_space<vmem>>, vector<1x32xf32>
    %41 = vector.broadcast %40 : vector<1x32xf32> to vector<16x32xf32>
    %42 = arith.addf %39, %41 : vector<16x32xf32>
    %43 = arith.negf %42 : vector<16x32xf32>
    %44 = math.exp %43 : vector<16x32xf32>
    %cst_30 = arith.constant 1.000000e+00 : f32
    %45 = vector.broadcast %cst_30 : f32 to vector<16x32xf32>
    %46 = arith.addf %45, %44 : vector<16x32xf32>
    %47 = arith.divf %45, %46 : vector<16x32xf32>
    %c0_31 = arith.constant 0 : index
    %c0_32 = arith.constant 0 : index
    %48 = vector.load %arg7[%c0_31, %c0_32] : memref<1x32xf32, #tpu.memory_space<vmem>>, vector<1x32xf32>
    %49 = vector.broadcast %48 : vector<1x32xf32> to vector<16x32xf32>
    %50 = arith.mulf %47, %49 : vector<16x32xf32>
    %cst_33 = arith.constant dense<0.000000e+00> : vector<16xf32>
    %51 = vector.multi_reduction <add>, %50, %cst_33 [1] : vector<16x32xf32> to vector<16xf32>
    %52 = vector.shape_cast %51 : vector<16xf32> to vector<16x1xf32>
    %c0_34 = arith.constant 0 : index
    %c0_35 = arith.constant 0 : index
    %53 = vector.load %arg10[%c0_34, %c0_35] : memref<16x1xf32, #tpu.memory_space<vmem>>, vector<16x1xf32>
    tpu.vector_store %arg10[%c0_34, %c0_35], %52 {strides = array<i32>} : memref<16x1xf32, #tpu.memory_space<vmem>>, vector<16x1xf32>,
    return
  }
}

</mosaic_0001>

<llo_original>
// kernel: _gcn_pallas_forward.1
$region0: #{_gcn_pallas_forward.1}
  #allocation0 [shape = 'u32[]', space=smem, size = 0x4, offset = 0x4, fixed_abs, tag = 'smem constant byte address 0x4 - core index']
  #allocation1 [shape = 'u32[72,128]{1,0:T(1,128)}', space=vmem, size = 0x9000, scoped, tag = 'internal scratch']
  %s0 = inlined_call_operand.vmem [shape: bf16[32,32], index: 0, kind: input, shape index: {}]
  %s1 = inlined_call_operand.vmem [shape: bf16[32,9], index: 1, kind: input, shape index: {}]
  %s2 = inlined_call_operand.vmem [shape: bf16[9,32], index: 2, kind: input, shape index: {}]
  %s3 = inlined_call_operand.vmem [shape: bf16[32,32], index: 3, kind: input, shape index: {}]
  %s4 = inlined_call_operand.vmem [shape: bf16[32,32], index: 4, kind: input, shape index: {}]
  %s5 = inlined_call_operand.vmem [shape: bf16[32,32], index: 5, kind: input, shape index: {}]
  %s6 = inlined_call_operand.vmem [shape: f32[1,32], index: 6, kind: input, shape index: {}]
  %s7 = inlined_call_operand.vmem [shape: f32[1,32], index: 7, kind: input, shape index: {}]
  %s8 = inlined_call_operand.vmem [shape: s32[16,1], index: 8, kind: input, shape index: {}]
  %s9 = inlined_call_operand.vmem [shape: s32[16,1], index: 9, kind: input, shape index: {}]
  %s10 = inlined_call_operand.vmem [shape: f32[16,1], index: 10, kind: output, shape index: {}]
  %s11 = sld [smem:[#allocation0]]
  $region50: #{_gcn_pallas_forward.1} parent=0
    _
  %s13 = ssub.s32 1, %s11
  %s14 = scalar_select 0, %s13, %s11
  // Predicated region
  $region2: #{_gcn_pallas_forward.1} parent=0 // pred_check
    _
  $region3: #{_gcn_pallas_forward.1} parent=0 // pred_check_branch
    %16 = sbr.rel (0) target = $region5
  $region4: #{_gcn_pallas_forward.1} parent=0 // pred_region
    _
  $region5: #{_gcn_pallas_forward.1} parent=0 // pred_fallthru
    _
  // Predicated region
  $region6: #{_gcn_pallas_forward.1} parent=0 // pred_check
    _
  $region7: #{_gcn_pallas_forward.1} parent=0 // pred_check_branch
    %18 = sbr.rel (0) target = $region9
  $region8: #{_gcn_pallas_forward.1} parent=0 // pred_region
    _
  $region9: #{_gcn_pallas_forward.1} parent=0 // pred_fallthru
    _
  // Predicated region
  $region10: #{_gcn_pallas_forward.1} parent=0 // pred_check
    _
  $region11: #{_gcn_pallas_forward.1} parent=0 // pred_check_branch
    %20 = sbr.rel (0) target = $region13
  $region12: #{_gcn_pallas_forward.1} parent=0 // pred_region
    _
  $region13: #{_gcn_pallas_forward.1} parent=0 // pred_fallthru
    _
  // Predicated region
  $region14: #{_gcn_pallas_forward.1} parent=0 // pred_check
    _
  $region15: #{_gcn_pallas_forward.1} parent=0 // pred_check_branch
    %22 = sbr.rel (0) target = $region17
  $region16: #{_gcn_pallas_forward.1} parent=0 // pred_region
    _
  $region17: #{_gcn_pallas_forward.1} parent=0 // pred_fallthru
    _
  // Predicated region
  $region18: #{_gcn_pallas_forward.1} parent=0 // pred_check
    _
  $region19: #{_gcn_pallas_forward.1} parent=0 // pred_check_branch
    %24 = sbr.rel (0) target = $region21
  $region20: #{_gcn_pallas_forward.1} parent=0 // pred_region
    _
  $region21: #{_gcn_pallas_forward.1} parent=0 // pred_fallthru
    _
  // Predicated region
  $region22: #{_gcn_pallas_forward.1} parent=0 // pred_check
    _
  $region23: #{_gcn_pallas_forward.1} parent=0 // pred_check_branch
    %26 = sbr.rel (0) target = $region25
  $region24: #{_gcn_pallas_forward.1} parent=0 // pred_region
    _
  $region25: #{_gcn_pallas_forward.1} parent=0 // pred_fallthru
    _
  // Predicated region
  $region26: #{_gcn_pallas_forward.1} parent=0 // pred_check
    _
  $region27: #{_gcn_pallas_forward.1} parent=0 // pred_check_branch
    %28 = sbr.rel (0) target = $region29
  $region28: #{_gcn_pallas_forward.1} parent=0 // pred_region
    _
  $region29: #{_gcn_pallas_forward.1} parent=0 // pred_fallthru
    _
  // Predicated region
  $region30: #{_gcn_pallas_forward.1} parent=0 // pred_check
    _
  $region31: #{_gcn_pallas_forward.1} parent=0 // pred_check_branch
    %30 = sbr.rel (0) target = $region33
  $region32: #{_gcn_pallas_forward.1} parent=0 // pred_region
    _
  $region33: #{_gcn_pallas_forward.1} parent=0 // pred_fallthru
    _
  // Predicated region
  $region34: #{_gcn_pallas_forward.1} parent=0 // pred_check
    _
  $region35: #{_gcn_pallas_forward.1} parent=0 // pred_check_branch
    %32 = sbr.rel (0) target = $region37
  $region36: #{_gcn_pallas_forward.1} parent=0 // pred_region
    _
  $region37: #{_gcn_pallas_forward.1} parent=0 // pred_fallthru
    _
  // Predicated region
  $region38: #{_gcn_pallas_forward.1} parent=0 // pred_check
    _
  $region39: #{_gcn_pallas_forward.1} parent=0 // pred_check_branch
    %34 = sbr.rel (0) target = $region41
  $region40: #{_gcn_pallas_forward.1} parent=0 // pred_region
    _
  $region41: #{_gcn_pallas_forward.1} parent=0 // pred_fallthru
    _
  %v36 = vld [vmem:[%s0] sm:$0xf]
  %v37 = vld [vmem:[%s0 + $0x4] sm:$0xf]
  %v38 = vld [vmem:[%s0 + $0x8] sm:$0xf]
  %v39 = vld [vmem:[%s0 + $0xc] sm:$0xf]
  %v40 = vld [vmem:[%s1] sm:$0xf]
  %v41 = vld [vmem:[%s1 + $0x4] sm:$0xf]
  %v42 = vld [vmem:[%s1 + $0x8] sm:$0xf]
  %v43 = vld [vmem:[%s1 + $0xc] sm:$0xf]
  %v48 = vunpack.c.l.b16 %v36
  %v49 = vunpack.c.l.b16 %v37
  %v50 = vunpack.c.l.b16 %v38
  %v51 = vunpack.c.l.b16 %v39
  %v52 = vpack.c.b16 %v49, %v48
  %v53 = vpack.c.b16 %v51, %v50
  %v58 = vunpack.c.l.b16 %v40
  %v59 = vunpack.c.l.b16 %v41
  %v60 = vunpack.c.l.b16 %v42
  %v61 = vunpack.c.l.b16 %v43
  %v62 = vpack.c.b16 %v59, %v58
  %v63 = vpack.c.b16 %v61, %v60
  %vm66 = vcmask 261120
  %v68 = vsel %vm66, %v52, 0
  %v71 = vsel %vm66, %v53, 0
  %73 = vmatpush.bf16.msra.mxu0 0
  %74 = vmatpush.bf16.msra.mxu0 0
  %75 = vmatpush.bf16.msra.mxu0 0
  %76 = vmatpush.bf16.msra.mxu0 0
  %77 = vmatpush.bf16.msra.mxu0 0
  %78 = vmatpush.bf16.msra.mxu0 0
  %79 = vmatpush.bf16.msra.mxu0 %v63
  %80 = vmatpush.bf16.msra.mxu0 %v62
  %81 = vmatmul.bf16.gmra.mxu0 %v68
  %v82 = vpop.f32.mrf.mxu0
  %v83 = vadd.f32 0.0, %v82
  %v84 = vpop.f32.mrf.mxu0
  %v85 = vadd.f32 0.0, %v84
  %86 = vmatmul.bf16.gmra.mxu0 %v71
  %v87 = vpop.f32.mrf.mxu0
  %v88 = vadd.f32 0.0, %v87
  %v89 = vpop.f32.mrf.mxu0
  %v90 = vadd.f32 0.0, %v89
  %91 = vdwg.mxu0
  %v92 = vpack.c.bf16 %v85, %v83
  %v93 = vpack.c.bf16 %v90, %v88
  %v94 = vld [vmem:[%s2] sm:$0xf]
  %v95 = vld [vmem:[%s2 + $0x4] sm:$0x1]
  %v98 = vunpack.c.l.b16 %v94
  %v99 = vunpack.c.l.b16 %v95
  %v100 = vpack.c.b16 %v99, %v98
  %vm101 = vcmask 72704
  %v103 = vsel %vm101, %v92, 0
  %v106 = vsel %vm101, %v93, 0
  %vm108 = vcmask 1043456
  %vm109 = vcmask 1044480
  %v110 = vsel %vm108, 4294967295, 65535
  %v111 = vsel %vm109, %v110, 0
  %v113 = vand.u32 %v100, %v111
  %115 = vmatpush.bf16.msra.mxu0 0
  %116 = vmatpush.bf16.msra.mxu0 0
  %117 = vmatpush.bf16.msra.mxu0 0
  %118 = vmatpush.bf16.msra.mxu0 0
  %119 = vmatpush.bf16.msra.mxu0 0
  %120 = vmatpush.bf16.msra.mxu0 0
  %121 = vmatpush.bf16.msra.mxu0 0
  %122 = vmatpush.bf16.msra.mxu0 %v113
  %123 = vmatmul.bf16.gmra.mxu0 %v103
  %v124 = vpop.f32.mrf.mxu0
  %v125 = vadd.f32 0.0, %v124
  %v126 = vpop.f32.mrf.mxu0
  %v127 = vadd.f32 0.0, %v126
  %128 = vmatmul.bf16.gmra.mxu0 %v106
  %v129 = vpop.f32.mrf.mxu0
  %v130 = vadd.f32 0.0, %v129
  %v131 = vpop.f32.mrf.mxu0
  %v132 = vadd.f32 0.0, %v131
  %133 = vdwg.mxu0
  %v134 = vmax.f32 %v125, 0.0
  %v135 = vmax.f32 %v127, 0.0
  %v136 = vmax.f32 %v130, 0.0
  %v137 = vmax.f32 %v132, 0.0
  %v138 = vpack.c.bf16 %v135, %v134
  %v139 = vpack.c.bf16 %v137, %v136
  %140 = vmatpush.bf16.msra.mxu0 0
  %141 = vmatpush.bf16.msra.mxu0 0
  %142 = vmatpush.bf16.msra.mxu0 0
  %143 = vmatpush.bf16.msra.mxu0 0
  %144 = vmatpush.bf16.msra.mxu0 0
  %145 = vmatpush.bf16.msra.mxu0 0
  %146 = vmatpush.bf16.msra.mxu0 %v139
  %147 = vmatpush.bf16.msra.mxu0 %v138
  %148 = vmatmul.bf16.gmra.mxu0 %v68
  %v149 = vpop.f32.mrf.mxu0
  %v150 = vadd.f32 0.0, %v149
  %v151 = vpop.f32.mrf.mxu0
  %v152 = vadd.f32 0.0, %v151
  %153 = vmatmul.bf16.gmra.mxu0 %v71
  %v154 = vpop.f32.mrf.mxu0
  %v155 = vadd.f32 0.0, %v154
  %v156 = vpop.f32.mrf.mxu0
  %v157 = vadd.f32 0.0, %v156
  %158 = vdwg.mxu0
  %v159 = vpack.c.bf16 %v152, %v150
  %v160 = vpack.c.bf16 %v157, %v155
  %v161 = vld [vmem:[%s3] sm:$0xf]
  %v162 = vld [vmem:[%s3 + $0x4] sm:$0xf]
  %v163 = vld [vmem:[%s3 + $0x8] sm:$0xf]
  %v164 = vld [vmem:[%s3 + $0xc] sm:$0xf]
  %v169 = vunpack.c.l.b16 %v161
  %v170 = vunpack.c.l.b16 %v162
  %v171 = vunpack.c.l.b16 %v163
  %v172 = vunpack.c.l.b16 %v164
  %v173 = vpack.c.b16 %v170, %v169
  %v174 = vpack.c.b16 %v172, %v171
  %v178 = vsel %vm66, %v159, 0
  %v181 = vsel %vm66, %v160, 0
  %183 = vmatpush.bf16.msra.mxu0 0
  %184 = vmatpush.bf16.msra.mxu0 0
  %185 = vmatpush.bf16.msra.mxu0 0
  %186 = vmatpush.bf16.msra.mxu0 0
  %187 = vmatpush.bf16.msra.mxu0 0
  %188 = vmatpush.bf16.msra.mxu0 0
  %189 = vmatpush.bf16.msra.mxu0 %v174
  %190 = vmatpush.bf16.msra.mxu0 %v173
  %191 = vmatmul.bf16.gmra.mxu0 %v178
  %v192 = vpop.f32.mrf.mxu0
  %v193 = vadd.f32 0.0, %v192
  %v194 = vpop.f32.mrf.mxu0
  %v195 = vadd.f32 0.0, %v194
  %196 = vmatmul.bf16.gmra.mxu0 %v181
  %v197 = vpop.f32.mrf.mxu0
  %v198 = vadd.f32 0.0, %v197
  %v199 = vpop.f32.mrf.mxu0
  %v200 = vadd.f32 0.0, %v199
  %201 = vdwg.mxu0
  %v202 = vmax.f32 %v193, 0.0
  %v203 = vmax.f32 %v195, 0.0
  %v204 = vmax.f32 %v198, 0.0
  %v205 = vmax.f32 %v200, 0.0
  %v206 = vpack.c.bf16 %v203, %v202
  %v207 = vpack.c.bf16 %v205, %v204
  %v208 = vlaneseq
  %v209 = vand.u32 %v208, 127
  %v210 = vld [vmem:[%s8] sm:$0xff]
  %v211 = vld [vmem:[%s8 + $0x8] sm:$0xff]
  %212 = vset.pattern.permute.xlu0 0
  %213 = vperm.xlu0 %212, %v210
  %v214 = vpop.permute.xlu0 %213
  %215 = vset.pattern.permute.xlu0 0
  %216 = vperm.xlu0 %215, %v211
  %v217 = vpop.permute.xlu0 %216
  %vm218 = vcmp.eq.s32.totalorder %v209, %v214
  %vm219 = vcmp.eq.s32.totalorder %v209, %v217
  %v220 = vsel %vm218, 1.0, 0.0
  %v221 = vsel %vm219, 1.0, 0.0
  %v222 = vpack.c.bf16 %v221, %v220
  %v223 = vld [vmem:[%s9] sm:$0xff]
  %v224 = vld [vmem:[%s9 + $0x8] sm:$0xff]
  %225 = vset.pattern.permute.xlu0 0
  %226 = vperm.xlu0 %225, %v223
  %v227 = vpop.permute.xlu0 %226
  %228 = vset.pattern.permute.xlu0 0
  %229 = vperm.xlu0 %228, %v224
  %v230 = vpop.permute.xlu0 %229
  %vm231 = vcmp.eq.s32.totalorder %v209, %v227
  %vm232 = vcmp.eq.s32.totalorder %v209, %v230
  %v233 = vsel %vm231, 1.0, 0.0
  %v234 = vsel %vm232, 1.0, 0.0
  %v235 = vpack.c.bf16 %v234, %v233
  %v237 = vsel %vm66, %v222, 0
  %239 = vmatpush.bf16.msra.mxu0 0
  %240 = vmatpush.bf16.msra.mxu0 0
  %241 = vmatpush.bf16.msra.mxu0 0
  %242 = vmatpush.bf16.msra.mxu0 0
  %243 = vmatpush.bf16.msra.mxu0 0
  %244 = vmatpush.bf16.msra.mxu0 0
  %245 = vmatpush.bf16.msra.mxu0 %v207
  %246 = vmatpush.bf16.msra.mxu0 %v206
  %247 = vmatmul.bf16.gmra.mxu0 %v237
  %v248 = vpop.f32.mrf.mxu0
  %v249 = vadd.f32 0.0, %v248
  %v250 = vpop.f32.mrf.mxu0
  %v251 = vadd.f32 0.0, %v250
  %252 = vdwg.mxu0
  %v253 = vpack.c.bf16 %v251, %v249
  %v255 = vsel %vm66, %v235, 0
  %257 = vmatpush.bf16.msra.mxu0 0
  %258 = vmatpush.bf16.msra.mxu0 0
  %259 = vmatpush.bf16.msra.mxu0 0
  %260 = vmatpush.bf16.msra.mxu0 0
  %261 = vmatpush.bf16.msra.mxu0 0
  %262 = vmatpush.bf16.msra.mxu0 0
  %263 = vmatpush.bf16.msra.mxu0 %v207
  %264 = vmatpush.bf16.msra.mxu0 %v206
  %265 = vmatmul.bf16.gmra.mxu0 %v255
  %v266 = vpop.f32.mrf.mxu0
  %v267 = vadd.f32 0.0, %v266
  %v268 = vpop.f32.mrf.mxu0
  %v269 = vadd.f32 0.0, %v268
  %270 = vdwg.mxu0
  %v271 = vpack.c.bf16 %v269, %v267
  %v272 = vld [vmem:[%s4] sm:$0xf]
  %v273 = vld [vmem:[%s4 + $0x4] sm:$0xf]
  %v274 = vld [vmem:[%s4 + $0x8] sm:$0xf]
  %v275 = vld [vmem:[%s4 + $0xc] sm:$0xf]
  %v276 = vld [vmem:[%s5] sm:$0xf]
  %v277 = vld [vmem:[%s5 + $0x4] sm:$0xf]
  %v278 = vld [vmem:[%s5 + $0x8] sm:$0xf]
  %v279 = vld [vmem:[%s5 + $0xc] sm:$0xf]
  %v284 = vunpack.c.l.b16 %v276
  %v285 = vunpack.c.l.b16 %v277
  %v286 = vunpack.c.l.b16 %v278
  %v287 = vunpack.c.l.b16 %v279
  %v288 = vpack.c.b16 %v285, %v284
  %v289 = vpack.c.b16 %v287, %v286
  %v293 = vsel %vm66, %v271, 0
  %295 = vmatpush.bf16.msra.mxu0 0
  %296 = vmatpush.bf16.msra.mxu0 0
  %297 = vmatpush.bf16.msra.mxu0 0
  %298 = vmatpush.bf16.msra.mxu0 0
  %299 = vmatpush.bf16.msra.mxu0 0
  %300 = vmatpush.bf16.msra.mxu0 0
  %301 = vmatpush.bf16.msra.mxu0 %v289
  %302 = vmatpush.bf16.msra.mxu0 %v288
  %303 = vmatmul.bf16.gmra.mxu0 %v293
  %v304 = vpop.f32.mrf.mxu0
  %v305 = vadd.f32 0.0, %v304
  %v306 = vpop.f32.mrf.mxu0
  %v307 = vadd.f32 0.0, %v306
  %308 = vdwg.mxu0
  %v313 = vunpack.c.l.b16 %v272
  %v314 = vunpack.c.l.b16 %v273
  %v315 = vunpack.c.l.b16 %v274
  %v316 = vunpack.c.l.b16 %v275
  %v317 = vpack.c.b16 %v314, %v313
  %v318 = vpack.c.b16 %v316, %v315
  %v322 = vsel %vm66, %v253, 0
  %324 = vmatpush.bf16.msra.mxu0 0
  %325 = vmatpush.bf16.msra.mxu0 0
  %326 = vmatpush.bf16.msra.mxu0 0
  %327 = vmatpush.bf16.msra.mxu0 0
  %328 = vmatpush.bf16.msra.mxu0 0
  %329 = vmatpush.bf16.msra.mxu0 0
  %330 = vmatpush.bf16.msra.mxu0 %v318
  %331 = vmatpush.bf16.msra.mxu0 %v317
  %332 = vmatmul.bf16.gmra.mxu0 %v322
  %v333 = vpop.f32.mrf.mxu0
  %v334 = vadd.f32 %v305, %v333
  %v335 = vpop.f32.mrf.mxu0
  %v336 = vadd.f32 %v307, %v335
  %337 = vdwg.mxu0
  %v338 = vld [vmem:[%s6] sm:$0x1]
  %v340 = vperm.slane %v338, 0
  %v342 = vadd.f32 %v334, %v340
  %v343 = vadd.f32 %v336, %v340
  %v344 = vxor.u32 %v342, 2147483648
  %v345 = vxor.u32 %v343, 2147483648
  %v346 = vmul.f32 %v344, 1.442695
  %v347 = vpow.pop %v346
  %v348 = vmul.f32 %v345, 1.442695
  %v349 = vpow.pop %v348
  %v350 = vadd.f32 %v347, 1.0
  %v351 = vadd.f32 %v349, 1.0
  %v352 = vrcp.pop %v350
  %v353 = vmul.f32 %v350, %v352
  %v354 = vsub.f32 1.0, %v353
  %v355 = vmul.f32 %v352, %v354
  %v356 = vadd.f32 %v352, %v355
  %vm357 = vweird.f32 %v350
  %vm358 = vweird.f32 %v352
  %vm359 = vmor %vm357, %vm358
  %v360 = vsel %vm359, %v352, %v356
  %v361 = vand.u32 2147483647, %v350
  %vm362 = vcmp.eq.f32.partialorder %v361, 8.507059e+37
  %v363 = vand.u32 %v350, 2147483648
  %v364 = vor.u32 1.1754944e-38, %v363
  %v365 = vsel %vm362, %v364, %v360
  %v366 = vmul.f32 1.0, %v365
  %v367 = vrcp.pop %v351
  %v368 = vmul.f32 %v351, %v367
  %v369 = vsub.f32 1.0, %v368
  %v370 = vmul.f32 %v367, %v369
  %v371 = vadd.f32 %v367, %v370
  %vm372 = vweird.f32 %v351
  %vm373 = vweird.f32 %v367
  %vm374 = vmor %vm372, %vm373
  %v375 = vsel %vm374, %v367, %v371
  %v376 = vand.u32 2147483647, %v351
  %vm377 = vcmp.eq.f32.partialorder %v376, 8.507059e+37
  %v378 = vand.u32 %v351, 2147483648
  %v379 = vor.u32 1.1754944e-38, %v378
  %v380 = vsel %vm377, %v379, %v375
  %v381 = vmul.f32 1.0, %v380
  %v382 = vld [vmem:[%s7] sm:$0x1]
  %v384 = vperm.slane %v382, 0
  %v386 = vmul.f32 %v366, %v384
  %v387 = vmul.f32 %v381, %v384
  %v388 = vsel %vm66, %v386, 0.0
  %389 = vadd.xlane.f32.xlu0 %v388
  %v390 = vpop.xlane.xlu0 %389
  %v391 = vsel %vm66, %v387, 0.0
  %392 = vadd.xlane.f32.xlu0 %v391
  %v393 = vpop.xlane.xlu0 %392
  %vm394 = vcmask 7168
  %395 = vst.msk [vmem:[%s10] sm:$0xff] %vm394, %v390
  %396 = vst.msk [vmem:[%s10 + $0x8] sm:$0xff] %vm394, %v393
  // Predicated region
  $region42: #{_gcn_pallas_forward.1} parent=0 // pred_check
    _
  $region43: #{_gcn_pallas_forward.1} parent=0 // pred_check_branch
    %398 = sbr.rel (0) target = $region45
  $region44: #{_gcn_pallas_forward.1} parent=0 // pred_region
    _
  $region45: #{_gcn_pallas_forward.1} parent=0 // pred_fallthru
    _
  // Predicated region
  $region46: #{_gcn_pallas_forward.1} parent=0 // pred_check
    _
  $region47: #{_gcn_pallas_forward.1} parent=0 // pred_check_branch
    %400 = sbr.rel (0) target = $region49
  $region48: #{_gcn_pallas_forward.1} parent=0 // pred_region
    _
  $region49: #{_gcn_pallas_forward.1} parent=0 // pred_fallthru
    _

</llo_original>
